<compile_context>
chip_gen: v6e
topology: v6e:2x2x1
jax: 0.10.0
libtpu: 0.0.40
codegen_flags: <defaults>
</compile_context>

<pallas_src>
import math

import jax
import jax.numpy as jnp
from jax.experimental import pallas as pl
from jax.experimental.pallas import tpu as pltpu


# --------------------------------------------------------------------------
# Fused kernel: all layers in one pass, activations stay in vregs/VMEM only.
# Layout: features on sublanes, batch on lanes (h is (d_feat, TM)).
# --------------------------------------------------------------------------
def _make_fused_mlp_kernel(n_layers):
    def kernel(*refs):
        x_ref = refs[0]                                   # (d_in, TM) bf16
        w_refs = refs[1:1 + n_layers]                     # (d_out_l, d_in_l) bf16
        b_refs = refs[1 + n_layers:1 + 2 * n_layers]      # (d_out_l, 1) f32
        o_ref = refs[1 + 2 * n_layers]                    # (d_final, TM) f32

        h = x_ref[...]                                    # bf16 straight into the MXU
        for l in range(n_layers):                         # static unroll at trace time
            h = jnp.dot(w_refs[l][...], h,
                        preferred_element_type=jnp.float32)   # (d_out, TM) f32, MXU
            h = h + b_refs[l][...]                        # lane-dense bcast over batch
            h = jnp.maximum(h, 0.0)                       # ReLU in f32 (VPU)
            if l + 1 < n_layers:
                h = h.astype(jnp.bfloat16)                # bf16 into the next MXU pass
        o_ref[...] = h.astype(o_ref.dtype)

    return kernel


def deepsurv_forward(x_fm, w_fms, b_cols, *,
                     max_batch_tile=8192, min_batch_tile=512, core_splits=2):
    """Single pallas_call for the whole DeepSurv MLP (feature-major dataflow).

    x_fm   : (d_in, B) bf16, feature-major input (batch on the lane axis)
    w_fms  : tuple of folded weights, layer l -> (d_out_l, d_in_l) bf16
    b_cols : tuple of folded biases,  layer l -> (d_out_l, 1) f32
    returns: (d_final, B) f32 (transpose/reshape in the caller for (B, d_final))
    """
    d_in, B = x_fm.shape
    n_layers = len(w_fms)
    d_final = w_fms[-1].shape[0]

    LANE = 128

    def _round_up(v, m):
        return ((v + m - 1) // m) * m

    # Batch tiling: big lane-major tiles (>=512 rows, <=8192), split into >=2
    # tiles when the batch is large enough so both v7x TensorCores get work;
    # tiny batches take a single full-extent tile (block == full array dim).
    if B <= LANE:
        tm = B
    else:
        tm = max(min_batch_tile, _round_up(pl.cdiv(B, core_splits), LANE))
        tm = min(tm, max_batch_tile, _round_up(B, LANE))
    grid = (pl.cdiv(B, tm),)

    x_spec = pl.BlockSpec((d_in, tm), lambda i: (0, i))
    w_specs = [pl.BlockSpec(w.shape, lambda i: (0, 0)) for w in w_fms]   # VMEM-resident
    b_specs = [pl.BlockSpec(b.shape, lambda i: (0, 0)) for b in b_cols]  # VMEM-resident
    out_spec = pl.BlockSpec((d_final, tm), lambda i: (0, i))

    flops = int(sum(2 * B * w.shape[0] * w.shape[1] for w in w_fms))
    bytes_accessed = int(
        x_fm.size * 2                                  # bf16 activations in
        + sum(w.size * 2 for w in w_fms)               # bf16 weights
        + sum(b.size * 4 for b in b_cols)              # f32 biases
        + B * d_final * 4)                             # f32 output

    return pl.pallas_call(
        _make_fused_mlp_kernel(n_layers),
        out_shape=jax.ShapeDtypeStruct((d_final, B), jnp.float32),
        grid_spec=pltpu.PrefetchScalarGridSpec(
            num_scalar_prefetch=0,
            grid=grid,
            in_specs=[x_spec, *w_specs, *b_specs],
            out_specs=out_spec,
        ),
        compiler_params=pltpu.CompilerParams(
            dimension_semantics=("parallel",),         # shard batch tiles across TCs
        ),
        cost_estimate=pl.CostEstimate(
            flops=flops, transcendentals=0, bytes_accessed=bytes_accessed),
    )(x_fm, *w_fms, *b_cols)


# --------------------------------------------------------------------------
# Parameter init (raw, PyTorch-equivalent) and BatchNorm folding.
# --------------------------------------------------------------------------
def init_deepsurv_params(key, dims, norm=True):
    """Raw parameters matching DeepSurv.__init__ layer shapes.

    Uses non-trivial (random) BatchNorm gamma/beta/running stats so the
    folding math is genuinely exercised by the self-check.
    """
    raw = []
    for i in range(len(dims) - 1):
        d_in, d_out = dims[i], dims[i + 1]
        key, kw, kb, kg, kbe, km, kv = jax.random.split(key, 7)
        # PyTorch Linear default init: U(-1/sqrt(d_in), 1/sqrt(d_in))
        bound = 1.0 / math.sqrt(d_in)
        w = jax.random.uniform(kw, (d_out, d_in), jnp.float32, -bound, bound)
        b = jax.random.uniform(kb, (d_out,), jnp.float32, -bound, bound)
        if norm:
            gamma = jax.random.uniform(kg, (d_out,), jnp.float32, 0.5, 1.5)
            beta = 0.1 * jax.random.normal(kbe, (d_out,), jnp.float32)
            running_mean = 0.1 * jax.random.normal(km, (d_out,), jnp.float32)
            running_var = jax.random.uniform(kv, (d_out,), jnp.float32, 0.5, 2.0)
        else:
            gamma = jnp.ones((d_out,), jnp.float32)
            beta = jnp.zeros((d_out,), jnp.float32)
            running_mean = jnp.zeros((d_out,), jnp.float32)
            running_var = jnp.ones((d_out,), jnp.float32)
        raw.append(dict(w=w, b=b, gamma=gamma, beta=beta,
                        running_mean=running_mean, running_var=running_var))
    return raw


def fold_params(raw_params, norm=True, eps=1e-5):
    """Fold eval-mode BatchNorm1d into Linear, feature-major:
       W' = W * scale[:, None] (bf16), b' = b*scale + shift (f32, column)."""
    w_fms, b_cols, d_outs = [], [], []
    for p in raw_params:
        d_out = p["w"].shape[0]
        if norm:
            scale = p["gamma"] / jnp.sqrt(p["running_var"] + eps)
            shift = p["beta"] - p["running_mean"] * scale
        else:
            scale = jnp.ones((d_out,), jnp.float32)
            shift = jnp.zeros((d_out,), jnp.float32)
        w_fms.append((p["w"] * scale[:, None]).astype(jnp.bfloat16))      # (d_out, d_in)
        b_cols.append((p["b"] * scale + shift).astype(jnp.float32)
                      .reshape(d_out, 1))                                  # (d_out, 1)
        d_outs.append(d_out)
    return tuple(w_fms), tuple(b_cols), tuple(d_outs)


# --------------------------------------------------------------------------
# References.
# --------------------------------------------------------------------------
def ref_forward_folded(x_fm, w_fms, b_cols):
    """Same-precision reference (folded bf16 weights, f32 accumulation)."""
    n_layers = len(w_fms)
    h = x_fm
    for l in range(n_layers):
        h = jnp.dot(w_fms[l], h, preferred_element_type=jnp.float32) + b_cols[l]
        h = jnp.maximum(h, 0.0)
        if l + 1 < n_layers:
            h = h.astype(jnp.bfloat16)
    return h  # (d_final, B) f32


def ref_forward_unfolded(x, raw_params, norm=True, eps=1e-5):
    """UNFOLDED f32 Linear + BatchNorm1d(eval) + ReLU reference (batch-major)."""
    h = x
    for p in raw_params:
        h = h @ p["w"].T + p["b"]
        if norm:
            h = (h - p["running_mean"]) / jnp.sqrt(p["running_var"] + eps)
            h = h * p["gamma"] + p["beta"]
        h = jnp.maximum(h, 0.0)
    return h


if __name__ == "__main__":
    # config equivalent:
    # {'drop': 0.2, 'norm': True, 'dims': [16, 32, 32, 1], 'activation': 'ReLU'}
    config = dict(drop=0.2, norm=True, dims=[16, 32, 32, 1], activation="ReLU")
    dims = config["dims"]
    batch = 8

    key = jax.random.PRNGKey(0)
    key, kx = jax.random.split(key)
    x = jax.random.normal(kx, (batch, dims[0]), jnp.float32)   # module-facing (B, d_in)

    raw = init_deepsurv_params(key, dims, norm=config["norm"])
    w_fms, b_cols, d_outs = fold_params(raw, norm=config["norm"])

    # Feature-major bf16 view of x. (At scale, supply x feature-major directly
    # to avoid this wrapper-side transpose pass over x.)
    x_fm = x.T.astype(jnp.bfloat16)

    out_fm = deepsurv_forward(x_fm, w_fms, b_cols)
    out_fm = jax.block_until_ready(out_fm)                     # (1, B)
    out = out_fm.T                                             # (B, 1), module layout

    # 1) Tight check vs. a same-precision folded reference (validates the
    #    Pallas lowering / transposed layout).
    ref_fold = ref_forward_folded(x_fm, w_fms, b_cols)
    assert out_fm.shape == (dims[-1], batch)
    err_fold = float(jnp.max(jnp.abs(out_fm - ref_fold)))
    assert err_fold < 1e-4, f"folded-ref max abs err = {err_fold}"

    # 2) Loose check vs. the UNFOLDED f32 Linear + BatchNorm1d(eval) + ReLU
    #    reference (validates the BN folding; slack covers bf16 rounding).
    ref = ref_forward_unfolded(x, raw, norm=config["norm"])
    assert out.shape == (batch, dims[-1])
    assert jnp.allclose(out, ref, atol=5e-2, rtol=5e-2), (
        "unfolded-ref max abs err = %g" % float(jnp.max(jnp.abs(out - ref))))

    print("KERNEL_OK")
</pallas_src>

<mosaic_0001>
module attributes {stable_mosaic.version = 11 : i64} {
  func.func @kernel(%arg0: i32, %arg1: memref<16x8xbf16, #tpu.memory_space<vmem>>, %arg2: memref<32x16xbf16, #tpu.memory_space<vmem>>, %arg3: memref<32x32xbf16, #tpu.memory_space<vmem>>, %arg4: memref<1x32xbf16, #tpu.memory_space<vmem>>, %arg5: memref<32x1xf32, #tpu.memory_space<vmem>>, %arg6: memref<32x1xf32, #tpu.memory_space<vmem>>, %arg7: memref<1x1xf32, #tpu.memory_space<vmem>>, %arg8: memref<1x8xf32, #tpu.memory_space<vmem>>) attributes {dimension_semantics = [#tpu.dimension_semantics<parallel>], iteration_bounds = array<i64: 1>, scalar_prefetch = 0 : i64, scratch_operands = 0 : i64, tpu.core_type = #tpu.core_type<tc>, window_params = [{transform_indices = @transform_0, window_bounds = array<i64: 16, 8>}, {pipeline_mode = #tpu.pipeline_mode<synchronous>, transform_indices = @transform_1, window_bounds = array<i64: 32, 16>}, {pipeline_mode = #tpu.pipeline_mode<synchronous>, transform_indices = @transform_2, window_bounds = array<i64: 32, 32>}, {pipeline_mode = #tpu.pipeline_mode<synchronous>, transform_indices = @transform_3, window_bounds = array<i64: 1, 32>}, {pipeline_mode = #tpu.pipeline_mode<synchronous>, transform_indices = @transform_4, window_bounds = array<i64: 32, 1>}, {pipeline_mode = #tpu.pipeline_mode<synchronous>, transform_indices = @transform_5, window_bounds = array<i64: 32, 1>}, {pipeline_mode = #tpu.pipeline_mode<synchronous>, transform_indices = @transform_6, window_bounds = array<i64: 1, 1>}, {transform_indices = @transform_7, window_bounds = array<i64: 1, 8>}]} {
    %c0 = arith.constant 0 : index
    %c0_0 = arith.constant 0 : index
    %0 = vector.load %arg1[%c0, %c0_0] : memref<16x8xbf16, #tpu.memory_space<vmem>>, vector<16x8xbf16>
    %c0_1 = arith.constant 0 : index
    %c0_2 = arith.constant 0 : index
    %1 = vector.load %arg2[%c0_1, %c0_2] : memref<32x16xbf16, #tpu.memory_space<vmem>>, vector<32x16xbf16>
    %cst = arith.constant dense<0.000000e+00> : vector<32x8xf32>
    %2 = tpu.matmul %1, %0, %cst {dimension_numbers = #tpu.dot_dimension_numbers<[1], [0], [0], [1], [0, 0, 1, 1], [], []>} : vector<32x16xbf16>, vector<16x8xbf16>, vector<32x8xf32> -> vector<32x8xf32>
    %c0_3 = arith.constant 0 : index
    %c0_4 = arith.constant 0 : index
    %3 = vector.load %arg5[%c0_3, %c0_4] : memref<32x1xf32, #tpu.memory_space<vmem>>, vector<32x1xf32>
    %4 = vector.broadcast %3 : vector<32x1xf32> to vector<32x8xf32>
    %5 = arith.addf %2, %4 : vector<32x8xf32>
    %cst_5 = arith.constant 0.000000e+00 : f32
    %6 = vector.broadcast %cst_5 : f32 to vector<32x8xf32>
    %7 = arith.maximumf %5, %6 : vector<32x8xf32>
    %8 = arith.truncf %7 : vector<32x8xf32> to vector<32x8xbf16>
    %c0_6 = arith.constant 0 : index
    %c0_7 = arith.constant 0 : index
    %9 = vector.load %arg3[%c0_6, %c0_7] : memref<32x32xbf16, #tpu.memory_space<vmem>>, vector<32x32xbf16>
    %cst_8 = arith.constant dense<0.000000e+00> : vector<32x8xf32>
    %10 = tpu.matmul %9, %8, %cst_8 {dimension_numbers = #tpu.dot_dimension_numbers<[1], [0], [0], [1], [0, 0, 1, 1], [], []>} : vector<32x32xbf16>, vector<32x8xbf16>, vector<32x8xf32> -> vector<32x8xf32>
    %c0_9 = arith.constant 0 : index
    %c0_10 = arith.constant 0 : index
    %11 = vector.load %arg6[%c0_9, %c0_10] : memref<32x1xf32, #tpu.memory_space<vmem>>, vector<32x1xf32>
    %12 = vector.broadcast %11 : vector<32x1xf32> to vector<32x8xf32>
    %13 = arith.addf %10, %12 : vector<32x8xf32>
    %cst_11 = arith.constant 0.000000e+00 : f32
    %14 = vector.broadcast %cst_11 : f32 to vector<32x8xf32>
    %15 = arith.maximumf %13, %14 : vector<32x8xf32>
    %16 = arith.truncf %15 : vector<32x8xf32> to vector<32x8xbf16>
    %c0_12 = arith.constant 0 : index
    %c0_13 = arith.constant 0 : index
    %17 = vector.load %arg4[%c0_12, %c0_13] : memref<1x32xbf16, #tpu.memory_space<vmem>>, vector<1x32xbf16>
    %cst_14 = arith.constant dense<0.000000e+00> : vector<1x8xf32>
    %18 = tpu.matmul %17, %16, %cst_14 {dimension_numbers = #tpu.dot_dimension_numbers<[1], [0], [0], [1], [0, 0, 1, 1], [], []>} : vector<1x32xbf16>, vector<32x8xbf16>, vector<1x8xf32> -> vector<1x8xf32>
    %c0_15 = arith.constant 0 : index
    %c0_16 = arith.constant 0 : index
    %19 = vector.load %arg7[%c0_15, %c0_16] : memref<1x1xf32, #tpu.memory_space<vmem>>, vector<1x1xf32>
    %20 = vector.broadcast %19 : vector<1x1xf32> to vector<1x8xf32>
    %21 = arith.addf %18, %20 : vector<1x8xf32>
    %cst_17 = arith.constant 0.000000e+00 : f32
    %22 = vector.broadcast %cst_17 : f32 to vector<1x8xf32>
    %23 = arith.maximumf %21, %22 : vector<1x8xf32>
    %c0_18 = arith.constant 0 : index
    %c0_19 = arith.constant 0 : index
    %24 = vector.load %arg8[%c0_18, %c0_19] : memref<1x8xf32, #tpu.memory_space<vmem>>, vector<1x8xf32>
    tpu.vector_store %arg8[%c0_18, %c0_19], %23 {strides = array<i32>} : memref<1x8xf32, #tpu.memory_space<vmem>>, vector<1x8xf32>,
    return
  }
  func.func @transform_0(%arg0: i32) -> (i32, i32) {
    %c0_i32 = arith.constant 0 : i32
    %c0_i32_0 = arith.constant 0 : i32
    return %c0_i32, %arg0 : i32, i32
  }
  func.func @transform_1(%arg0: i32) -> (i32, i32) {
    %c0_i32 = arith.constant 0 : i32
    %c0_i32_0 = arith.constant 0 : i32
    %c0_i32_1 = arith.constant 0 : i32
    return %c0_i32, %c0_i32_0 : i32, i32
  }
  func.func @transform_2(%arg0: i32) -> (i32, i32) {
    %c0_i32 = arith.constant 0 : i32
    %c0_i32_0 = arith.constant 0 : i32
    %c0_i32_1 = arith.constant 0 : i32
    return %c0_i32, %c0_i32_0 : i32, i32
  }
  func.func @transform_3(%arg0: i32) -> (i32, i32) {
    %c0_i32 = arith.constant 0 : i32
    %c0_i32_0 = arith.constant 0 : i32
    %c0_i32_1 = arith.constant 0 : i32
    return %c0_i32, %c0_i32_0 : i32, i32
  }
  func.func @transform_4(%arg0: i32) -> (i32, i32) {
    %c0_i32 = arith.constant 0 : i32
    %c0_i32_0 = arith.constant 0 : i32
    %c0_i32_1 = arith.constant 0 : i32
    return %c0_i32, %c0_i32_0 : i32, i32
  }
  func.func @transform_5(%arg0: i32) -> (i32, i32) {
    %c0_i32 = arith.constant 0 : i32
    %c0_i32_0 = arith.constant 0 : i32
    %c0_i32_1 = arith.constant 0 : i32
    return %c0_i32, %c0_i32_0 : i32, i32
  }
  func.func @transform_6(%arg0: i32) -> (i32, i32) {
    %c0_i32 = arith.constant 0 : i32
    %c0_i32_0 = arith.constant 0 : i32
    %c0_i32_1 = arith.constant 0 : i32
    return %c0_i32, %c0_i32_0 : i32, i32
  }
  func.func @transform_7(%arg0: i32) -> (i32, i32) {
    %c0_i32 = arith.constant 0 : i32
    %c0_i32_0 = arith.constant 0 : i32
    return %c0_i32, %arg0 : i32, i32
  }
}

</mosaic_0001>

<llo_original>
// kernel: tpu_custom_call.1
$region0: #{tpu_custom_call.1}
  #allocation0 [shape = 'u32[]', space=smem, size = 0x4, offset = 0x4, fixed_abs, tag = 'smem constant byte address 0x4 - core index']
  #allocation1 [shape = 'u32[144,128]{1,0:T(1,128)}', space=vmem, size = 0x12000, scoped, tag = 'internal scratch']
  #allocation2 [shape = 'f32[1,1]{1,0:T(1,128)S(1)}', space=vmem, size = 0x200, scoped, tag = 'scoped memory for tpu_custom_call.1']
  %s0 = inlined_call_operand.vmem [shape: bf16[16,8], index: 0, kind: input, shape index: {}]
  %s1 = inlined_call_operand.vmem [shape: bf16[32,16], index: 1, kind: input, shape index: {}]
  %s2 = inlined_call_operand.vmem [shape: bf16[32,32], index: 2, kind: input, shape index: {}]
  %s3 = inlined_call_operand.vmem [shape: bf16[1,32], index: 3, kind: input, shape index: {}]
  %s4 = inlined_call_operand.vmem [shape: f32[32,1], index: 4, kind: input, shape index: {}]
  %s5 = inlined_call_operand.vmem [shape: f32[32,1], index: 5, kind: input, shape index: {}]
  %s6 = inlined_call_operand.<no memory space> [shape: f32[1,1], index: 6, kind: input, shape index: {}]
  %s7 = inlined_call_operand.hbm [shape: f32[1,8], index: 7, kind: output, shape index: {}]
  %s8 = sld [smem:[#allocation0]]
  $region38: #{tpu_custom_call.1} parent=0
    _
  %s10 = ssub.s32 1, %s8
  %s11 = scalar_select 0, %s10, %s8
  %v12 = vstv %s6
  %13 = vst [vmem:[#allocation2] sm:$0x1] %v12
  $region1: #{tpu_custom_call.1} parent=0
    #allocation3 [shape = 'u8[512]{0}', space=vmem, size = 0x400, scoped, tag = 'output window, operand 0, single buffered']
    #allocation4 [shape = 's32[1]{0}', space=sflag, size = 0x4, scoped, tag = 'scoped memory for tpu_custom_call.1']
    %14 = vsyncpa [#allocation4], 0
    // Predicated region
    $region2: #{tpu_custom_call.1} parent=1 // pred_check
      _
    $region3: #{tpu_custom_call.1} parent=1 // pred_check_branch
      %16 = sbr.rel (0) target = $region5
    $region4: #{tpu_custom_call.1} parent=1 // pred_region
      _
    $region5: #{tpu_custom_call.1} parent=1 // pred_fallthru
      _
    // Predicated region
    $region6: #{tpu_custom_call.1} parent=1 // pred_check
      _
    $region7: #{tpu_custom_call.1} parent=1 // pred_check_branch
      %18 = sbr.rel (0) target = $region9
    $region8: #{tpu_custom_call.1} parent=1 // pred_region
      _
    $region9: #{tpu_custom_call.1} parent=1 // pred_fallthru
      _
    // Predicated region
    $region10: #{tpu_custom_call.1} parent=1 // pred_check
      _
    $region11: #{tpu_custom_call.1} parent=1 // pred_check_branch
      %20 = sbr.rel (0) target = $region13
    $region12: #{tpu_custom_call.1} parent=1 // pred_region
      _
    $region13: #{tpu_custom_call.1} parent=1 // pred_fallthru
      _
    // Predicated region
    $region14: #{tpu_custom_call.1} parent=1 // pred_check
      _
    $region15: #{tpu_custom_call.1} parent=1 // pred_check_branch
      %22 = sbr.rel (0) target = $region17
    $region16: #{tpu_custom_call.1} parent=1 // pred_region
      _
    $region17: #{tpu_custom_call.1} parent=1 // pred_fallthru
      _
    // Predicated region
    $region18: #{tpu_custom_call.1} parent=1 // pred_check
      _
    $region19: #{tpu_custom_call.1} parent=1 // pred_check_branch
      %24 = sbr.rel (0) target = $region21
    $region20: #{tpu_custom_call.1} parent=1 // pred_region
      _
    $region21: #{tpu_custom_call.1} parent=1 // pred_fallthru
      _
    // Predicated region
    $region22: #{tpu_custom_call.1} parent=1 // pred_check
      _
    $region23: #{tpu_custom_call.1} parent=1 // pred_check_branch
      %26 = sbr.rel (0) target = $region25
    $region24: #{tpu_custom_call.1} parent=1 // pred_region
      _
    $region25: #{tpu_custom_call.1} parent=1 // pred_fallthru
      _
    // Predicated region
    $region26: #{tpu_custom_call.1} parent=1 // pred_check
      _
    $region27: #{tpu_custom_call.1} parent=1 // pred_check_branch
      %28 = sbr.rel (0) target = $region29
    $region28: #{tpu_custom_call.1} parent=1 // pred_region
      _
    $region29: #{tpu_custom_call.1} parent=1 // pred_fallthru
      _
    %v30 = vld [vmem:[%s0] sm:$0xf]
    %v31 = vld [vmem:[%s0 + $0x4] sm:$0xf]
    %v32 = vld [vmem:[%s1] sm:$0xf]
    %v33 = vld [vmem:[%s1 + $0x4] sm:$0xf]
    %v34 = vld [vmem:[%s1 + $0x8] sm:$0xf]
    %v35 = vld [vmem:[%s1 + $0xc] sm:$0xf]
    %v36 = vld [vmem:[%s4] sm:$0xff]
    %v37 = vld [vmem:[%s4 + $0x8] sm:$0xff]
    %v38 = vld [vmem:[%s4 + $0x10] sm:$0xff]
    %v39 = vld [vmem:[%s4 + $0x18] sm:$0xff]
    %41 = vset.pattern.permute.xlu0 0
    %42 = vperm.xlu0 %41, %v36
    %v43 = vpop.permute.xlu0 %42
    %46 = vset.pattern.permute.xlu0 0
    %47 = vperm.xlu0 %46, %v37
    %v48 = vpop.permute.xlu0 %47
    %51 = vset.pattern.permute.xlu0 0
    %52 = vperm.xlu0 %51, %v38
    %v53 = vpop.permute.xlu0 %52
    %56 = vset.pattern.permute.xlu0 0
    %57 = vperm.xlu0 %56, %v39
    %v58 = vpop.permute.xlu0 %57
    %v64 = vunpack.c.l.b16 %v32
    %v65 = vunpack.c.l.b16 %v33
    %v66 = vunpack.c.l.b16 %v34
    %v67 = vunpack.c.l.b16 %v35
    %v68 = vpack.c.b16 %v65, %v64
    %v69 = vpack.c.b16 %v67, %v66
    %v72 = vunpack.c.l.b16 %v30
    %v73 = vunpack.c.l.b16 %v31
    %v74 = vpack.c.b16 %v73, %v72
    %vm76 = vcmask 130048
    %v78 = vsel %vm76, %v68, 0
    %v81 = vsel %vm76, %v69, 0
    %83 = vmatprep.subr.bf16.mxu0 0
    %84 = vmatpush1.bf16.msra.mxu0 0
    %85 = vmatprep.subr.bf16.mxu0 0
    %86 = vmatpush1.bf16.msra.mxu0 0
    %87 = vmatprep.subr.bf16.mxu0 0
    %88 = vmatpush1.bf16.msra.mxu0 0
    %89 = vmatprep.subr.bf16.mxu0 0
    %90 = vmatpush1.bf16.msra.mxu0 0
    %91 = vmatprep.subr.bf16.mxu0 0
    %92 = vmatpush1.bf16.msra.mxu0 0
    %93 = vmatprep.subr.bf16.mxu0 0
    %94 = vmatpush1.bf16.msra.mxu0 0
    %95 = vmatprep.subr.bf16.mxu0 0
    %96 = vmatpush1.bf16.msra.mxu0 0
    %97 = vmatprep.subr.bf16.mxu0 0
    %98 = vmatpush1.bf16.msra.mxu0 %v74
    %99 = vmatprep.subr.bf16.mxu0 0
    %100 = vmatpush2.bf16.msra.mxu0 0
    %101 = vmatprep.subr.bf16.mxu0 0
    %102 = vmatpush2.bf16.msra.mxu0 0
    %103 = vmatprep.subr.bf16.mxu0 0
    %104 = vmatpush2.bf16.msra.mxu0 0
    %105 = vmatprep.subr.bf16.mxu0 0
    %106 = vmatpush2.bf16.msra.mxu0 0
    %107 = vmatprep.subr.bf16.mxu0 0
    %108 = vmatpush2.bf16.msra.mxu0 0
    %109 = vmatprep.subr.bf16.mxu0 0
    %110 = vmatpush2.bf16.msra.mxu0 0
    %111 = vmatprep.subr.bf16.mxu0 0
    %112 = vmatpush2.bf16.msra.mxu0 0
    %113 = vmatprep.subr.bf16.mxu0 0
    %114 = vmatpush2.bf16.msra.mxu0 0
    %115 = vmatprep.mubr.bf16.mxu0 0
    %116 = vmatmul.mubr.bf16.gmra.mxu0 %v78
    %v117 = vpop.f32.mrf.mxu0
    %v118 = vadd.f32 %v43, %v117
    %v119 = vpop.f32.mrf.mxu0
    %v120 = vpop.f32.mrf.mxu0
    %v121 = vadd.f32 %v48, %v120
    %v122 = vpop.f32.mrf.mxu0
    %123 = vmatprep.mubr.bf16.mxu0 0
    %124 = vmatmul.mubr.bf16.gmra.mxu0 %v81
    %v125 = vpop.f32.mrf.mxu0
    %v126 = vadd.f32 %v53, %v125
    %v127 = vpop.f32.mrf.mxu0
    %v128 = vpop.f32.mrf.mxu0
    %v129 = vadd.f32 %v58, %v128
    %v130 = vpop.f32.mrf.mxu0
    %131 = vdwg.mxu0
    %v132 = vmax.f32 %v118, 0.0
    %v133 = vmax.f32 %v121, 0.0
    %v134 = vmax.f32 %v126, 0.0
    %v135 = vmax.f32 %v129, 0.0
    %v136 = vpack.c.bf16 %v133, %v132
    %v137 = vpack.c.bf16 %v135, %v134
    %v138 = vld [vmem:[%s2] sm:$0xf]
    %v139 = vld [vmem:[%s2 + $0x4] sm:$0xf]
    %v140 = vld [vmem:[%s2 + $0x8] sm:$0xf]
    %v141 = vld [vmem:[%s2 + $0xc] sm:$0xf]
    %v142 = vld [vmem:[%s5] sm:$0xff]
    %v143 = vld [vmem:[%s5 + $0x8] sm:$0xff]
    %v144 = vld [vmem:[%s5 + $0x10] sm:$0xff]
    %v145 = vld [vmem:[%s5 + $0x18] sm:$0xff]
    %147 = vset.pattern.permute.xlu0 0
    %148 = vperm.xlu0 %147, %v142
    %v149 = vpop.permute.xlu0 %148
    %152 = vset.pattern.permute.xlu0 0
    %153 = vperm.xlu0 %152, %v143
    %v154 = vpop.permute.xlu0 %153
    %157 = vset.pattern.permute.xlu0 0
    %158 = vperm.xlu0 %157, %v144
    %v159 = vpop.permute.xlu0 %158
    %162 = vset.pattern.permute.xlu0 0
    %163 = vperm.xlu0 %162, %v145
    %v164 = vpop.permute.xlu0 %163
    %v170 = vunpack.c.l.b16 %v138
    %v171 = vunpack.c.l.b16 %v139
    %v172 = vunpack.c.l.b16 %v140
    %v173 = vunpack.c.l.b16 %v141
    %v174 = vpack.c.b16 %v171, %v170
    %v175 = vpack.c.b16 %v173, %v172
    %vm176 = vcmask 261120
    %v178 = vsel %vm176, %v174, 0
    %v181 = vsel %vm176, %v175, 0
    %183 = vmatprep.subr.bf16.mxu0 0
    %184 = vmatpush1.bf16.msra.mxu0 0
    %185 = vmatprep.subr.bf16.mxu0 0
    %186 = vmatpush1.bf16.msra.mxu0 0
    %187 = vmatprep.subr.bf16.mxu0 0
    %188 = vmatpush1.bf16.msra.mxu0 0
    %189 = vmatprep.subr.bf16.mxu0 0
    %190 = vmatpush1.bf16.msra.mxu0 0
    %191 = vmatprep.subr.bf16.mxu0 0
    %192 = vmatpush1.bf16.msra.mxu0 0
    %193 = vmatprep.subr.bf16.mxu0 0
    %194 = vmatpush1.bf16.msra.mxu0 0
    %195 = vmatprep.subr.bf16.mxu0 0
    %196 = vmatpush1.bf16.msra.mxu0 %v137
    %197 = vmatprep.subr.bf16.mxu0 0
    %198 = vmatpush1.bf16.msra.mxu0 %v136
    %199 = vmatprep.subr.bf16.mxu0 0
    %200 = vmatpush2.bf16.msra.mxu0 0
    %201 = vmatprep.subr.bf16.mxu0 0
    %202 = vmatpush2.bf16.msra.mxu0 0
    %203 = vmatprep.subr.bf16.mxu0 0
    %204 = vmatpush2.bf16.msra.mxu0 0
    %205 = vmatprep.subr.bf16.mxu0 0
    %206 = vmatpush2.bf16.msra.mxu0 0
    %207 = vmatprep.subr.bf16.mxu0 0
    %208 = vmatpush2.bf16.msra.mxu0 0
    %209 = vmatprep.subr.bf16.mxu0 0
    %210 = vmatpush2.bf16.msra.mxu0 0
    %211 = vmatprep.subr.bf16.mxu0 0
    %212 = vmatpush2.bf16.msra.mxu0 0
    %213 = vmatprep.subr.bf16.mxu0 0
    %214 = vmatpush2.bf16.msra.mxu0 0
    %215 = vmatprep.mubr.bf16.mxu0 0
    %216 = vmatmul.mubr.bf16.gmra.mxu0 %v178
    %v217 = vpop.f32.mrf.mxu0
    %v218 = vadd.f32 %v149, %v217
    %v219 = vpop.f32.mrf.mxu0
    %v220 = vpop.f32.mrf.mxu0
    %v221 = vadd.f32 %v154, %v220
    %v222 = vpop.f32.mrf.mxu0
    %223 = vmatprep.mubr.bf16.mxu0 0
    %224 = vmatmul.mubr.bf16.gmra.mxu0 %v181
    %v225 = vpop.f32.mrf.mxu0
    %v226 = vadd.f32 %v159, %v225
    %v227 = vpop.f32.mrf.mxu0
    %v228 = vpop.f32.mrf.mxu0
    %v229 = vadd.f32 %v164, %v228
    %v230 = vpop.f32.mrf.mxu0
    %231 = vdwg.mxu0
    %v232 = vmax.f32 %v218, 0.0
    %v233 = vmax.f32 %v221, 0.0
    %v234 = vmax.f32 %v226, 0.0
    %v235 = vmax.f32 %v229, 0.0
    %v236 = vpack.c.bf16 %v233, %v232
    %v237 = vpack.c.bf16 %v235, %v234
    %v238 = vld [vmem:[%s3] sm:$0x1]
    %v239 = vld [vmem:[#allocation2] sm:$0x1]
    %241 = vset.pattern.permute.xlu0 0
    %242 = vperm.xlu0 %241, %v239
    %v243 = vpop.permute.xlu0 %242
    %v245 = vlaneseq
    %v246 = vshrl.u32 %v245, 7
    %v247 = vsub.s32 0, %v246
    %v248 = vrot.slane %v243, %v247
    %v250 = vsel %vm176, %v238, 0
    %252 = vmatprep.subr.bf16.mxu0 0
    %253 = vmatpush1.bf16.msra.mxu0 0
    %254 = vmatprep.subr.bf16.mxu0 0
    %255 = vmatpush1.bf16.msra.mxu0 0
    %256 = vmatprep.subr.bf16.mxu0 0
    %257 = vmatpush1.bf16.msra.mxu0 0
    %258 = vmatprep.subr.bf16.mxu0 0
    %259 = vmatpush1.bf16.msra.mxu0 0
    %260 = vmatprep.subr.bf16.mxu0 0
    %261 = vmatpush1.bf16.msra.mxu0 0
    %262 = vmatprep.subr.bf16.mxu0 0
    %263 = vmatpush1.bf16.msra.mxu0 0
    %264 = vmatprep.subr.bf16.mxu0 0
    %265 = vmatpush1.bf16.msra.mxu0 %v237
    %266 = vmatprep.subr.bf16.mxu0 0
    %267 = vmatpush1.bf16.msra.mxu0 %v236
    %268 = vmatprep.subr.bf16.mxu0 0
    %269 = vmatpush2.bf16.msra.mxu0 0
    %270 = vmatprep.subr.bf16.mxu0 0
    %271 = vmatpush2.bf16.msra.mxu0 0
    %272 = vmatprep.subr.bf16.mxu0 0
    %273 = vmatpush2.bf16.msra.mxu0 0
    %274 = vmatprep.subr.bf16.mxu0 0
    %275 = vmatpush2.bf16.msra.mxu0 0
    %276 = vmatprep.subr.bf16.mxu0 0
    %277 = vmatpush2.bf16.msra.mxu0 0
    %278 = vmatprep.subr.bf16.mxu0 0
    %279 = vmatpush2.bf16.msra.mxu0 0
    %280 = vmatprep.subr.bf16.mxu0 0
    %281 = vmatpush2.bf16.msra.mxu0 0
    %282 = vmatprep.subr.bf16.mxu0 0
    %283 = vmatpush2.bf16.msra.mxu0 0
    %284 = vmatprep.mubr.bf16.mxu0 0
    %285 = vmatmul.mubr.bf16.gmra.mxu0 %v250
    %v286 = vpop.f32.mrf.mxu0
    %v287 = vadd.f32 %v248, %v286
    %v288 = vpop.f32.mrf.mxu0
    %v289 = vpop.f32.mrf.mxu0
    %v290 = vpop.f32.mrf.mxu0
    %291 = vdwg.mxu0
    %v292 = vmax.f32 %v287, 0.0
    %vm293 = vcmask 57344
    %294 = vst.msk [vmem:[#allocation3] sm:$0x1] %vm293, %v292
    // Predicated region
    $region30: #{tpu_custom_call.1} parent=1 // pred_check
      _
    $region31: #{tpu_custom_call.1} parent=1 // pred_check_branch
      %296 = sbr.rel (0) target = $region33
    $region32: #{tpu_custom_call.1} parent=1 // pred_region
      %s298 = ssub.s32 16, 16
      %299 = vsyncadd [#allocation4], %s298
      %s301 = sshll.u32 [#allocation3], 4
      %s302 = int_to_ptr.vmem [resolvable:$true] %s301
      %304 = dma.vmem_to_hbm [thread:$0]  %s302, 16, %s7, [#allocation4]
    $region33: #{tpu_custom_call.1} parent=1 // pred_fallthru
      _
    // Predicated region
    $region34: #{tpu_custom_call.1} parent=1 // pred_check
      _
    $region35: #{tpu_custom_call.1} parent=1 // pred_check_branch
      %306 = sbr.rel (0) target = $region37
    $region36: #{tpu_custom_call.1} parent=1 // pred_region
      %307 = dma.done [#allocation4], 16
    $region37: #{tpu_custom_call.1} parent=1 // pred_fallthru
      _
    %308 = vsyncpa [#allocation4], 1

</llo_original>
